<compile_context>
chip_gen: v7x
topology: tpu7x:2x2x1
jax: 0.10.0
libtpu: 0.0.40
codegen_flags: <defaults>
</compile_context>

<pallas_src>
import functools

import jax
import jax.numpy as jnp
from jax.experimental import pallas as pl
from jax.experimental.pallas import tpu as pltpu

_EPS = 1e-5
_LANE = 128


def _cdiv(a: int, b: int) -> int:
    return (a + b - 1) // b


def _vmem_capacity_bytes() -> int:
    try:
        return int(pltpu.get_tpu_info().vmem_capacity_bytes)
    except Exception:
        return 64 * 1024 * 1024  # conservative default (v7x per-core VMEM)


def _dice_sum_kernel(x_ref, t_ref, o_ref, *, tiles_per_chunk, num_tiles,
                     tile_len, hw, needs_mask, has_overrun):
    """Accumulate the sum of dice coefficients for one (b, chunk, tile) step."""
    chk = pl.program_id(1)
    ti = pl.program_id(2)
    gt = chk * tiles_per_chunk + ti  # global tile index along the HW axis

    @pl.when(ti == 0)
    def _init():
        o_ref[...] = jnp.zeros_like(o_ref)

    x = x_ref[...].astype(jnp.float32)   # (1, C,  tile_len)
    t = t_ref[...].astype(jnp.float32)   # (1, Ct, tile_len); broadcasts if Ct==1
    dice = (2.0 * x * t + _EPS) / (x + t + _EPS)

    def _acc_full():
        o_ref[...] += jnp.sum(dice)

    def _acc_tail():
        tail = hw - (num_tiles - 1) * tile_len  # valid elements in last tile
        lane = jax.lax.broadcasted_iota(jnp.int32, dice.shape, 2)
        o_ref[...] += jnp.sum(jnp.where(lane < tail, dice, 0.0))

    if not needs_mask and not has_overrun:
        _acc_full()                               # hot path: no masking at all
    elif needs_mask:
        pl.when(gt < num_tiles - 1)(_acc_full)    # full interior tiles
        pl.when(gt == num_tiles - 1)(_acc_tail)   # ragged last tile
        # gt >= num_tiles (overrun slot of the chunked grid): skip.
    else:
        pl.when(gt < num_tiles)(_acc_full)        # only overrun slots to skip


def dice_loss(inp: jax.Array, target: jax.Array, *, max_tile_elems=None) -> jax.Array:
    """1 - mean dice coefficient (matches DiceLoss.forward)."""
    inp = jnp.asarray(inp)
    tgt = jnp.asarray(target)
    if inp.dtype.itemsize > 4:
        inp = inp.astype(jnp.float32)
    B, C, H, W = inp.shape
    HW = H * W

    # ---- normalize target: expand_as(input) without materializing it ------
    if tgt.ndim < 4:
        tgt = tgt.reshape((1,) * (4 - tgt.ndim) + tgt.shape)
    if not (tgt.ndim == 4 and tgt.shape[2:] == (H, W)
            and tgt.shape[0] in (1, B) and tgt.shape[1] in (1, C)):
        # Rare layouts (e.g. broadcast over H/W): materialize the expansion.
        tgt = jnp.broadcast_to(tgt, (B, C, H, W))
    if tgt.dtype == jnp.bool_:
        tgt = tgt.astype(jnp.int8)       # keep the DMA path narrow
    elif tgt.dtype.itemsize > 4:
        tgt = tgt.astype(jnp.float32)
    Bt, Ct = tgt.shape[0], tgt.shape[1]

    x3 = inp.reshape(B, C, HW)
    t3 = tgt.reshape(Bt, Ct, HW)

    # ---- tile sizing: DMA double-buffers + in-kernel f32 temporaries ------
    vmem_cap = _vmem_capacity_bytes()
    vmem_budget = int(vmem_cap * 0.55)   # headroom for Mosaic internals
    f32 = 4
    bytes_per_spatial = (C * (2 * x3.dtype.itemsize + 3 * f32)   # x bufs + f32 temps
                         + Ct * (2 * t3.dtype.itemsize + f32)    # t bufs + f32 cast
                         + f32)                                  # iota / mask temp
    tile_budget = max(_LANE, (vmem_budget // bytes_per_spatial) // _LANE * _LANE)
    if max_tile_elems is not None:
        tile_budget = max(_LANE, min(tile_budget, (max_tile_elems // _LANE) * _LANE))

    if HW <= tile_budget:
        tile_len, num_tiles = HW, 1      # full-extent block (exempt from 128 rule)
    else:
        tile_len, num_tiles = tile_budget, _cdiv(HW, tile_budget)

    # Megacore balance: with B == 1 the only parallel work is the tile axis.
    num_chunks = 2 if (B == 1 and num_tiles >= 2) else 1
    tiles_per_chunk = _cdiv(num_tiles, num_chunks)
    needs_mask = num_tiles > 1 and (HW % tile_len != 0)
    has_overrun = num_chunks * tiles_per_chunk > num_tiles

    # ---- specs -------------------------------------------------------------
    if has_overrun:
        def hw_block(chk, t):
            # Clamp overrun slots to the last real tile (their contribution is
            # skipped in the kernel); keeps every DMA in bounds.
            return jnp.minimum(chk * tiles_per_chunk + t, num_tiles - 1)
    else:
        def hw_block(chk, t):
            return chk * tiles_per_chunk + t

    x_spec = pl.BlockSpec((1, C, tile_len),
                          lambda b, chk, t: (b, 0, hw_block(chk, t)))
    if Bt == 1 and B > 1:
        t_spec = pl.BlockSpec((1, Ct, tile_len),
                              lambda b, chk, t: (0, 0, hw_block(chk, t)))
    else:
        t_spec = pl.BlockSpec((1, Ct, tile_len),
                              lambda b, chk, t: (b, 0, hw_block(chk, t)))
    out_spec = pl.BlockSpec((1, 1, 1, 1), lambda b, chk, t: (b, chk, 0, 0))

    kernel = functools.partial(
        _dice_sum_kernel,
        tiles_per_chunk=tiles_per_chunk, num_tiles=num_tiles, tile_len=tile_len,
        hw=HW, needs_mask=needs_mask, has_overrun=has_overrun)

    partials = pl.pallas_call(
        kernel,
        out_shape=jax.ShapeDtypeStruct((B, num_chunks, 1, 1), jnp.float32),
        grid=(B, num_chunks, tiles_per_chunk),
        in_specs=[x_spec, t_spec],
        out_specs=out_spec,
        compiler_params=pltpu.CompilerParams(
            dimension_semantics=("parallel", "parallel", "arbitrary"),
            vmem_limit_bytes=int(min(vmem_cap * 0.75, 112 * 1024 * 1024)),
        ),
    )(x3, t3)

    mean_dice = jnp.sum(partials) / jnp.float32(B * C * HW)
    # TODO(synk): PyTorch's forward returns a Python float via .item(); here we
    # return a 0-d JAX array instead.
    return (jnp.float32(1.0) - mean_dice).astype(jnp.float32)


if __name__ == "__main__":
    key = jax.random.PRNGKey(0)
    kx, kt, ks, kr, kq = jax.random.split(key, 5)

    B, C, H, W = 2, 4, 16, 16  # (batch, num_classes, height, width)
    x = jax.nn.softmax(jax.random.normal(kx, (B, C, H, W), dtype=jnp.float32), axis=1)

    def ref_loss(xx, tt):
        tb = jnp.broadcast_to(tt, xx.shape)
        return 1.0 - jnp.mean((2.0 * xx * tb + _EPS) / (xx + tb + _EPS))

    # Case 1: full-shape one-hot target (expand_as is a no-op).
    labels = jax.random.randint(kt, (B, 1, H, W), 0, C)
    target_full = (labels == jnp.arange(C).reshape(1, C, 1, 1)).astype(jnp.float32)
    loss1 = dice_loss(x, target_full)
    jax.block_until_ready(loss1)
    assert jnp.allclose(loss1, ref_loss(x, target_full), atol=1e-5, rtol=1e-5), loss1

    # Case 2: channel-broadcast target (B, 1, H, W) — broadcast via index_map.
    target_bcast = jax.random.uniform(ks, (B, 1, H, W), dtype=jnp.float32)
    loss2 = dice_loss(x, target_bcast)
    jax.block_until_ready(loss2)
    assert jnp.allclose(loss2, ref_loss(x, target_bcast), atol=1e-5, rtol=1e-5), loss2

    # Case 3: B=1, ragged spatial size (H*W not a multiple of the tile) with a
    # forced small tile -> exercises the masked tail, chunked (megacore) grid
    # and overrun-slot skipping.
    B3, C3, H3, W3 = 1, 3, 50, 50
    x3 = jax.nn.softmax(jax.random.normal(kr, (B3, C3, H3, W3), dtype=jnp.float32), axis=1)
    t3 = jax.random.uniform(kq, (B3, 1, H3, W3), dtype=jnp.float32)
    loss3 = dice_loss(x3, t3, max_tile_elems=1024)
    jax.block_until_ready(loss3)
    assert jnp.allclose(loss3, ref_loss(x3, t3), atol=1e-5, rtol=1e-5), loss3

    print("KERNEL_OK")
</pallas_src>

<mosaic_0001>
module attributes {stable_mosaic.version = 11 : i64} {
  func.func @_dice_sum_kernel(%arg0: i32, %arg1: i32, %arg2: i32, %arg3: memref<1x4x256xf32, #tpu.memory_space<vmem>>, %arg4: memref<1x4x256xf32, #tpu.memory_space<vmem>>, %arg5: memref<1x1x1x1xf32, #tpu.memory_space<vmem>>) attributes {dimension_semantics = [#tpu.dimension_semantics<parallel>, #tpu.dimension_semantics<parallel>, #tpu.dimension_semantics<arbitrary>], iteration_bounds = array<i64: 2, 1, 1>, scalar_prefetch = 0 : i64, scratch_operands = 0 : i64, tpu.core_type = #tpu.core_type<tc>, window_params = [{transform_indices = @transform_0, window_bounds = array<i64: 1, 4, 256>}, {transform_indices = @transform_1, window_bounds = array<i64: 1, 4, 256>}, {transform_indices = @transform_2, window_bounds = array<i64: 1, 1, 1, 1>}]} {
    %c0_i32 = arith.constant 0 : i32
    %0 = arith.cmpi eq, %arg2, %c0_i32 : i32
    %1 = arith.extui %0 : i1 to i32
    %c0_i32_0 = arith.constant 0 : i32
    %2 = arith.cmpi ne, %1, %c0_i32_0 : i32
    scf.if %2 {
      %cst_17 = arith.constant 0.000000e+00 : f32
      %22 = vector.broadcast %cst_17 : f32 to vector<1x1x1x1xf32>
      %c0_18 = arith.constant 0 : index
      %c0_19 = arith.constant 0 : index
      %c0_20 = arith.constant 0 : index
      %c0_21 = arith.constant 0 : index
      %23 = vector.load %arg5[%c0_18, %c0_19, %c0_20, %c0_21] : memref<1x1x1x1xf32, #tpu.memory_space<vmem>>, vector<1x1x1x1xf32>
      tpu.vector_store %arg5[%c0_18, %c0_19, %c0_20, %c0_21], %22 {strides = array<i32>} : memref<1x1x1x1xf32, #tpu.memory_space<vmem>>, vector<1x1x1x1xf32>,
    } else {
    }
    %c0 = arith.constant 0 : index
    %c0_1 = arith.constant 0 : index
    %c0_2 = arith.constant 0 : index
    %3 = vector.load %arg3[%c0, %c0_1, %c0_2] : memref<1x4x256xf32, #tpu.memory_space<vmem>>, vector<1x4x256xf32>
    %c0_3 = arith.constant 0 : index
    %c0_4 = arith.constant 0 : index
    %c0_5 = arith.constant 0 : index
    %4 = vector.load %arg4[%c0_3, %c0_4, %c0_5] : memref<1x4x256xf32, #tpu.memory_space<vmem>>, vector<1x4x256xf32>
    %cst = arith.constant 2.000000e+00 : f32
    %5 = vector.broadcast %cst : f32 to vector<1x4x256xf32>
    %6 = arith.mulf %5, %3 : vector<1x4x256xf32>
    %7 = arith.mulf %6, %4 : vector<1x4x256xf32>
    %cst_6 = arith.constant 9.99999974E-6 : f32
    %8 = vector.broadcast %cst_6 : f32 to vector<1x4x256xf32>
    %9 = arith.addf %7, %8 : vector<1x4x256xf32>
    %10 = arith.addf %3, %4 : vector<1x4x256xf32>
    %cst_7 = arith.constant 9.99999974E-6 : f32
    %11 = vector.broadcast %cst_7 : f32 to vector<1x4x256xf32>
    %12 = arith.addf %10, %11 : vector<1x4x256xf32>
    %13 = arith.divf %9, %12 : vector<1x4x256xf32>
    %c0_8 = arith.constant 0 : index
    %c0_9 = arith.constant 0 : index
    %c0_10 = arith.constant 0 : index
    %c0_11 = arith.constant 0 : index
    %14 = vector.load %arg5[%c0_8, %c0_9, %c0_10, %c0_11] : memref<1x1x1x1xf32, #tpu.memory_space<vmem>>, vector<1x1x1x1xf32>
    %15 = vector.shape_cast %13 : vector<1x4x256xf32> to vector<1x1x4x256xf32>
    %cst_12 = arith.constant dense<0.000000e+00> : vector<1xf32>
    %16 = vector.multi_reduction <add>, %15, %cst_12 [1, 2, 3] : vector<1x1x4x256xf32> to vector<1xf32>
    %17 = vector.shape_cast %16 : vector<1xf32> to vector<1x1x1x1xf32>
    %18 = vector.extract %17[0, 0, 0, 0] : f32 from vector<1x1x1x1xf32>
    %19 = vector.broadcast %18 : f32 to vector<1x1x1x1xf32>
    %20 = arith.addf %14, %19 : vector<1x1x1x1xf32>
    %c0_13 = arith.constant 0 : index
    %c0_14 = arith.constant 0 : index
    %c0_15 = arith.constant 0 : index
    %c0_16 = arith.constant 0 : index
    %21 = vector.load %arg5[%c0_13, %c0_14, %c0_15, %c0_16] : memref<1x1x1x1xf32, #tpu.memory_space<vmem>>, vector<1x1x1x1xf32>
    tpu.vector_store %arg5[%c0_13, %c0_14, %c0_15, %c0_16], %20 {strides = array<i32>} : memref<1x1x1x1xf32, #tpu.memory_space<vmem>>, vector<1x1x1x1xf32>,
    return
  }
  func.func @transform_0(%arg0: i32, %arg1: i32, %arg2: i32) -> (i32, i32, i32) {
    %c1_i32 = arith.constant 1 : i32
    %0 = arith.muli %arg1, %c1_i32 : i32
    %1 = arith.addi %0, %arg2 : i32
    %c0_i32 = arith.constant 0 : i32
    %c0_i32_0 = arith.constant 0 : i32
    return %arg0, %c0_i32, %1 : i32, i32, i32
  }
  func.func @transform_1(%arg0: i32, %arg1: i32, %arg2: i32) -> (i32, i32, i32) {
    %c1_i32 = arith.constant 1 : i32
    %0 = arith.muli %arg1, %c1_i32 : i32
    %1 = arith.addi %0, %arg2 : i32
    %c0_i32 = arith.constant 0 : i32
    %c0_i32_0 = arith.constant 0 : i32
    return %arg0, %c0_i32, %1 : i32, i32, i32
  }
  func.func @transform_2(%arg0: i32, %arg1: i32, %arg2: i32) -> (i32, i32, i32, i32) {
    %c0_i32 = arith.constant 0 : i32
    %c0_i32_0 = arith.constant 0 : i32
    %c0_i32_1 = arith.constant 0 : i32
    return %arg0, %arg1, %c0_i32, %c0_i32_0 : i32, i32, i32, i32
  }
}

</mosaic_0001>

<llo_original>
// kernel: tpu_custom_call.1
$region0: #{tpu_custom_call.1}
  #allocation0 [shape = 'u32[]', space=smem, size = 0x4, offset = 0x4, fixed_abs, tag = 'smem constant byte address 0x4 - core index']
  #allocation1 [shape = 'u32[144,128]{1,0:T(1,128)}', space=vmem, size = 0x12000, scoped, tag = 'internal scratch']
  %s0 = inlined_call_operand.hbm [shape: f32[2,4,256], index: 0, kind: input, shape index: {}]
  %s1 = inlined_call_operand.hbm [shape: f32[2,4,256], index: 1, kind: input, shape index: {}]
  %s2 = inlined_call_operand.vmem [shape: f32[2,1,1,1], index: 2, kind: output, shape index: {}]
  %s3 = sld [smem:[#allocation0]]
  $region53: #{tpu_custom_call.1} parent=0
    _
  %s5 = ssub.s32 1, %s3
  %s6 = scalar_select 0, %s5, %s3
  $region1: #{tpu_custom_call.1} parent=0
    #allocation2 [shape = 'u8[8192]{0}', space=vmem, size = 0x2000, scoped, tag = 'input window, operand 0']
    #allocation3 [shape = 's32[2]{0}', space=sflag, size = 0x8, scoped, tag = 'scoped memory for tpu_custom_call.1']
    #allocation4 [shape = 'u8[8192]{0}', space=vmem, size = 0x2000, scoped, tag = 'input window, operand 1']
    #allocation5 [shape = 's32[2]{0}', space=sflag, size = 0x8, scoped, tag = 'scoped memory for tpu_custom_call.1']
    %7 = vsyncpa [#allocation3], 0
    %s8 = scalar_lea.sflag [#allocation3], 1
    %9 = vsyncpa %s8, 0
    %10 = vsyncpa [#allocation5], 0
    %s11 = scalar_lea.sflag [#allocation5], 1
    %12 = vsyncpa %s11, 0
    loop: start=0, step=1, limit=4
    $region2: #{tpu_custom_call.1} parent=1 // loop_pre_header
      _
    $region3: #{tpu_custom_call.1} parent=1 // loop_header
      %s14 = sphi 0, %s18
      %p15 = scmp.ge.s32.totalorder %s14, 4
      %s21 = sphi 0, %s40
      %s22 = sphi 0, %s36
      %s23 = sphi 0, %s32
      %s24 = sphi 0, %s21
      %s25 = sphi 0, %s22
      %s26 = sphi 0, %s23
      %s27 = sphi 0, %s24
      %s28 = sphi 0, %s25
      %s29 = sphi 0, %s26
      %s47 = sphi 0, %s49
      %s50 = sphi 0, %s47
      %s51 = sphi 0, %s50
      %s67 = sphi 0, %s51
      %s77 = sphi 0, %s79
      %s80 = sphi 0, %s77
      %s81 = sphi 0, %s80
      %s97 = sphi 0, %s81
      %s105 = sphi 0, %s107
      %s108 = sphi 0, %s105
      %s109 = sphi 0, %s108
      %s125 = sphi 0, %s109
    $region4: #{tpu_custom_call.1} parent=1 // loop_header_branch
      %17 = sbr.rel (%p15) target = $region8
    $region5: #{tpu_custom_call.1} parent=1 // loop_body
      %s19 = ssub.s32 %s14, 1
      %s20 = ssub.s32 %s14, 2
      %s30 = sadd.s32 1, %s23
      %p31 = scmp.ge.s32.totalorder %s30, 1
      %s32 = scalar_select %p31, 0, %s30
      %s33 = sadd.s32 1, %s22
      %s34 = scalar_select %p31, %s33, %s22
      %p35 = scmp.ge.s32.totalorder %s34, 1
      %s36 = scalar_select %p35, 0, %s34
      %s37 = sadd.s32 1, %s21
      %s38 = scalar_select %p35, %s37, %s21
      %p39 = scmp.ge.s32.totalorder %s38, 2
      %s40 = scalar_select %p39, 0, %s38
      %s41 = sadd.s32 %s22, %s23
      %s42 = sadd.s32 %s36, %s32
      %s43 = ssub.s32 %s21, %s40
      %s44 = ssub.s32 %s41, %s42
      %s45 = sor.u32 %s43, %s44
      %p46 = scmp.eq.s32.totalorder %s45, 0
      %s48 = sadd.s32 %s47, 1
      %s49 = scalar_select %p46, %s47, %s48
      %p52 = pneg %p46
      %p53 = scmp.eq.s32.totalorder %s14, 1
      %p54 = por %p52, %p53
      %p55 = scmp.ne.s32.totalorder %s47, %s50
      %p56 = scmp.eq.s32.totalorder %s14, 0
      %p57 = por %p55, %p56
      %p58 = scmp.ne.s32.totalorder %s47, %s50
      %p59 = scmp.eq.s32.totalorder %s19, 1
      %p60 = por %p58, %p59
      %p61 = scmp.ne.s32.totalorder %s50, %s51
      %p62 = scmp.eq.s32.totalorder %s19, 0
      %p63 = por %p61, %p62
      %p64 = scmp.ne.s32.totalorder %s50, %s51
      %p65 = scmp.eq.s32.totalorder %s20, 1
      %p66 = por %p64, %p65
      %p68 = scmp.ne.s32.totalorder %s51, %s67
      %p69 = scmp.eq.s32.totalorder %s20, 0
      %p70 = por %p68, %p69
      %s71 = sadd.s32 %s22, %s23
      %s72 = sadd.s32 %s36, %s32
      %s73 = ssub.s32 %s21, %s40
      %s74 = ssub.s32 %s71, %s72
      %s75 = sor.u32 %s73, %s74
      %p76 = scmp.eq.s32.totalorder %s75, 0
      %s78 = sadd.s32 %s77, 1
      %s79 = scalar_select %p76, %s77, %s78
      %p82 = pneg %p76
      %p83 = scmp.eq.s32.totalorder %s14, 1
      %p84 = por %p82, %p83
      %p85 = scmp.ne.s32.totalorder %s77, %s80
      %p86 = scmp.eq.s32.totalorder %s14, 0
      %p87 = por %p85, %p86
      %p88 = scmp.ne.s32.totalorder %s77, %s80
      %p89 = scmp.eq.s32.totalorder %s19, 1
      %p90 = por %p88, %p89
      %p91 = scmp.ne.s32.totalorder %s80, %s81
      %p92 = scmp.eq.s32.totalorder %s19, 0
      %p93 = por %p91, %p92
      %p94 = scmp.ne.s32.totalorder %s80, %s81
      %p95 = scmp.eq.s32.totalorder %s20, 1
      %p96 = por %p94, %p95
      %p98 = scmp.ne.s32.totalorder %s81, %s97
      %p99 = scmp.eq.s32.totalorder %s20, 0
      %p100 = por %p98, %p99
      %s101 = ssub.s32 %s21, %s40
      %s102 = ssub.s32 %s22, %s36
      %s103 = sor.u32 %s101, %s102
      %p104 = scmp.eq.s32.totalorder %s103, 0
      %s106 = sadd.s32 %s105, 1
      %s107 = scalar_select %p104, %s105, %s106
      %p110 = pneg %p104
      %p111 = scmp.eq.s32.totalorder %s14, 1
      %p112 = por %p110, %p111
      %p113 = scmp.ne.s32.totalorder %s105, %s108
      %p114 = scmp.eq.s32.totalorder %s14, 0
      %p115 = por %p113, %p114
      %p116 = scmp.ne.s32.totalorder %s105, %s108
      %p117 = scmp.eq.s32.totalorder %s19, 1
      %p118 = por %p116, %p117
      %p119 = scmp.ne.s32.totalorder %s108, %s109
      %p120 = scmp.eq.s32.totalorder %s19, 0
      %p121 = por %p119, %p120
      %p122 = scmp.ne.s32.totalorder %s108, %s109
      %p123 = scmp.eq.s32.totalorder %s20, 1
      %p124 = por %p122, %p123
      %p126 = scmp.ne.s32.totalorder %s109, %s125
      %p127 = scmp.eq.s32.totalorder %s20, 0
      %p128 = por %p126, %p127
      %p129 = scmp.le.s32.totalorder 1, %s14
      %p130 = scmp.lt.s32.totalorder %s14, 3
      %p131 = pnand %p129, %p130
      %p132 = pneg %p131
      // Predicated region
      $region9: #{tpu_custom_call.1} parent=5 // pred_check
        _
      $region10: #{tpu_custom_call.1} parent=5 // pred_check_branch
        %134 = sbr.rel (%p131) target = $region12
      $region11: #{tpu_custom_call.1} parent=5 // pred_region
        %s135 = ssub.s32 %s14, 1
      $region12: #{tpu_custom_call.1} parent=5 // pred_fallthru
        _
      %p136 = scmp.lt.s32.totalorder %s14, 2
      // Predicated region
      $region13: #{tpu_custom_call.1} parent=5 // pred_check
        %p137 = pneg %p136
      $region14: #{tpu_custom_call.1} parent=5 // pred_check_branch
        %139 = sbr.rel (%p137) target = $region16
      $region15: #{tpu_custom_call.1} parent=5 // pred_region
        // Predicated region
        $region17: #{tpu_custom_call.1} parent=15 // pred_check
          %p140 = pneg %p57
        $region18: #{tpu_custom_call.1} parent=15 // pred_check_branch
          %142 = sbr.rel (%p140) target = $region20
        $region19: #{tpu_custom_call.1} parent=15 // pred_region
          %s143 = sand.u32 %s47, 1
          %s144 = scalar_lea.sflag [#allocation3], %s143
          %s145 = sand.u32 %s47, 1
          %s146 = smul.addr %s145, 8
          %s147 = scalar_lea.vmem [#allocation2], %s146
          %s148 = sadd.s32 %s22, %s23
          %s149 = smul.u32 2, %s148
          %s151 = ssub.s32 128, 128
          %152 = vsyncadd %s144, %s151
          %s153 = smul.addr %s21, 2
          %s154 = sadd.s32 %s149, %s153
          %s155 = smul.addr %s154, 64
          %s156 = scalar_lea.hbm %s0, %s155
          %s158 = sshll.u32 %s147, 4
          %s159 = int_to_ptr.vmem [resolvable:$true] %s158
          %161 = dma.hbm_to_vmem [thread:$0]  %s156, 128, %s159, %s144
        $region20: #{tpu_custom_call.1} parent=15 // pred_fallthru
          _
        // Predicated region
        $region21: #{tpu_custom_call.1} parent=15 // pred_check
          %p162 = pneg %p87
        $region22: #{tpu_custom_call.1} parent=15 // pred_check_branch
          %164 = sbr.rel (%p162) target = $region24
        $region23: #{tpu_custom_call.1} parent=15 // pred_region
          %s165 = sand.u32 %s77, 1
          %s166 = scalar_lea.sflag [#allocation5], %s165
          %s167 = sand.u32 %s77, 1
          %s168 = smul.addr %s167, 8
          %s169 = scalar_lea.vmem [#allocation4], %s168
          %s170 = sadd.s32 %s22, %s23
          %s171 = smul.u32 2, %s170
          %s173 = ssub.s32 128, 128
          %174 = vsyncadd %s166, %s173
          %s175 = smul.addr %s21, 2
          %s176 = sadd.s32 %s171, %s175
          %s177 = smul.addr %s176, 64
          %s178 = scalar_lea.hbm %s1, %s177
          %s180 = sshll.u32 %s169, 4
          %s181 = int_to_ptr.vmem [resolvable:$true] %s180
          %183 = dma.hbm_to_vmem [thread:$0]  %s178, 128, %s181, %s166
        $region24: #{tpu_custom_call.1} parent=15 // pred_fallthru
          _
      $region16: #{tpu_custom_call.1} parent=5 // pred_fallthru
        _
      %p184 = scmp.le.s32.totalorder 1, %s14
      %p185 = scmp.lt.s32.totalorder %s14, 3
      %p186 = pnand %p184, %p185
      %p187 = pneg %p186
      // Predicated region
      $region25: #{tpu_custom_call.1} parent=5 // pred_check
        _
      $region26: #{tpu_custom_call.1} parent=5 // pred_check_branch
        %189 = sbr.rel (%p186) target = $region28
      $region27: #{tpu_custom_call.1} parent=5 // pred_region
        %s190 = ssub.s32 %s14, 1
        %s191 = sand.u32 %s50, 1
        %s192 = scalar_lea.sflag [#allocation3], %s191
        %s193 = sand.u32 %s50, 1
        %s194 = smul.addr %s193, 8
        %s195 = scalar_lea.vmem [#allocation2], %s194
        // Predicated region
        $region29: #{tpu_custom_call.1} parent=27 // pred_check
          %p196 = pneg %p63
        $region30: #{tpu_custom_call.1} parent=27 // pred_check_branch
          %198 = sbr.rel (%p196) target = $region32
        $region31: #{tpu_custom_call.1} parent=27 // pred_region
          %199 = dma.done %s192, 128
        $region32: #{tpu_custom_call.1} parent=27 // pred_fallthru
          _
        %s200 = sand.u32 %s80, 1
        %s201 = scalar_lea.sflag [#allocation5], %s200
        %s202 = sand.u32 %s80, 1
        %s203 = smul.addr %s202, 8
        %s204 = scalar_lea.vmem [#allocation4], %s203
        // Predicated region
        $region33: #{tpu_custom_call.1} parent=27 // pred_check
          %p205 = pneg %p93
        $region34: #{tpu_custom_call.1} parent=27 // pred_check_branch
          %207 = sbr.rel (%p205) target = $region36
        $region35: #{tpu_custom_call.1} parent=27 // pred_region
          %208 = dma.done %s201, 128
        $region36: #{tpu_custom_call.1} parent=27 // pred_fallthru
          _
        %s209 = sand.u32 %s50, 1
        %s210 = scalar_lea.sflag [#allocation3], %s209
        %s211 = sand.u32 %s50, 1
        %s212 = smul.addr %s211, 8
        %s213 = scalar_lea.vmem [#allocation2], %s212
        %p214 = pneg %p63
        %p215 = pneg %p60
        %s216 = sand.u32 %s80, 1
        %s217 = scalar_lea.sflag [#allocation5], %s216
        %s218 = sand.u32 %s80, 1
        %s219 = smul.addr %s218, 8
        %s220 = scalar_lea.vmem [#allocation4], %s219
        %p221 = pneg %p93
        %p222 = pneg %p90
        %p223 = pneg %p121
        %p224 = pneg %p118
        %p225 = scmp.lt.s32.totalorder %s24, 1
        %s226 = scalar_select %p225, %s24, 1
        %p227 = scmp.lt.s32.totalorder %s25, 0
        %s228 = scalar_select %p227, %s25, 0
        %s229 = sadd.s32 %s228, %s226
        %s230 = scalar_lea.vmem %s2, %s229
        %s231 = sadd.s32 %s25, %s26
        %s232 = smul.u32 2, %s231
        %s233 = sadd.s32 %s25, %s26
        %s234 = smul.u32 2, %s233
        %p235 = scmp.lt.s32.totalorder %s24, 1
        %s236 = scalar_select %p235, %s24, 1
        %p237 = scmp.lt.s32.totalorder %s25, 0
        %s238 = scalar_select %p237, %s25, 0
        %s239 = sadd.s32 %s238, %s236
        %s240 = scalar_lea.vmem %s2, %s239
        %p241 = scmp.eq.s32.totalorder %s26, 0
        // Predicated region
        $region37: #{tpu_custom_call.1} parent=27 // pred_check
          %p242 = pneg %p241
        $region38: #{tpu_custom_call.1} parent=27 // pred_check_branch
          %244 = sbr.rel (%p242) target = $region40
        $region39: #{tpu_custom_call.1} parent=27 // pred_region
          %vm245 = vcmask 0
          %246 = vst.msk [vmem:[%s240] sm:$0x1] %vm245, 0.0
        $region40: #{tpu_custom_call.1} parent=27 // pred_fallthru
          _
        %v247 = vld [vmem:[%s195] sm:$0xff]
        %v248 = vld [vmem:[%s204] sm:$0xff]
        %v249 = vmul.f32 %v247, 2.0
        %v250 = vmul.f32 %v249, %v248
        %v251 = vadd.f32 %v250, 1e-05
        %v252 = vadd.f32 %v247, %v248
        %v253 = vadd.f32 %v252, 1e-05
        %v254 = vrcp.pop %v253
        %v255 = vmul.f32 %v251, %v254
        %v256 = vld [vmem:[%s240] sm:$0x1]
        %v258 = vcombine.high %v255, %v255
        %vm260 = vcmask 1043456
        %v261 = vsel %vm260, %v255, 0.0
        %v262 = vsel %vm260, %v258, 0.0
        %v263 = vadd.f32 %v261, %v262
        %264 = vadd.xlane.f32.xlu0 %v263
        %v265 = vpop.xlane.xlu0 %264
        %v266 = vrot.slane %v265, 4
        %v267 = vadd.f32 %v265, %v266
        %v268 = vrot.slane %v267, 2
        %v269 = vadd.f32 %v267, %v268
        %v270 = vrot.slane %v269, 1
        %v271 = vadd.f32 %v269, %v270
        %s272 = vtos %v271
        %v273 = vstv %s272
        %v274 = vadd.f32 %v256, %v273
        %vm275 = vcmask 0
        %276 = vst.msk [vmem:[%s240] sm:$0x1] %vm275, %v274
        %p277 = scmp.lt.s32.totalorder %s24, 1
        %s278 = scalar_select %p277, %s24, 1
        %p279 = scmp.lt.s32.totalorder %s25, 0
        %s280 = scalar_select %p279, %s25, 0
        %s281 = sadd.s32 %s280, %s278
        %s282 = scalar_lea.vmem %s2, %s281
        // Predicated region
        $region41: #{tpu_custom_call.1} parent=27 // pred_check
          %p283 = pneg %p118
        $region42: #{tpu_custom_call.1} parent=27 // pred_check_branch
          %285 = sbr.rel (%p283) target = $region44
        $region43: #{tpu_custom_call.1} parent=27 // pred_region
          _
        $region44: #{tpu_custom_call.1} parent=27 // pred_fallthru
          _
      $region28: #{tpu_custom_call.1} parent=5 // pred_fallthru
        _
      %p286 = scmp.le.s32.totalorder 2, %s14
      // Predicated region
      $region45: #{tpu_custom_call.1} parent=5 // pred_check
        %p287 = pneg %p286
      $region46: #{tpu_custom_call.1} parent=5 // pred_check_branch
        %289 = sbr.rel (%p287) target = $region48
      $region47: #{tpu_custom_call.1} parent=5 // pred_region
        %s290 = ssub.s32 %s14, 2
        // Predicated region
        $region49: #{tpu_custom_call.1} parent=47 // pred_check
          %p291 = pneg %p124
        $region50: #{tpu_custom_call.1} parent=47 // pred_check_branch
          %293 = sbr.rel (%p291) target = $region52
        $region51: #{tpu_custom_call.1} parent=47 // pred_region
          %p294 = scmp.lt.s32.totalorder %s27, 1
          %s295 = scalar_select %p294, %s27, 1
          %p296 = scmp.lt.s32.totalorder %s28, 0
          %s297 = scalar_select %p296, %s28, 0
          %s298 = sadd.s32 %s297, %s295
          %s299 = scalar_lea.vmem %s2, %s298
        $region52: #{tpu_custom_call.1} parent=47 // pred_fallthru
          _
      $region48: #{tpu_custom_call.1} parent=5 // pred_fallthru
        _
    $region6: #{tpu_custom_call.1} parent=1 // loop_footer
      %s18 = sadd.s32 1, %s14
    $region7: #{tpu_custom_call.1} parent=1 // loop_footer_branch
      %13 = sbr.rel target = $region3
    $region8: #{tpu_custom_call.1} parent=1 // loop_exit
      _
    %300 = vsyncpa [#allocation3], 1
    %s301 = scalar_lea.sflag [#allocation3], 1
    %302 = vsyncpa %s301, 1
    %303 = vsyncpa [#allocation5], 1
    %s304 = scalar_lea.sflag [#allocation5], 1
    %305 = vsyncpa %s304, 1

</llo_original>
